<compile_context>
chip_gen: v7x
topology: tpu7x:2x2x1
jax: 0.10.0
libtpu: 0.0.40
codegen_flags: <defaults>
</compile_context>

<pallas_src>
import jax
import jax.numpy as jnp
from jax.experimental import pallas as pl
from jax.experimental.pallas import tpu as pltpu


_LANE = 128
# 48 MiB scoped VMEM: safe on v5e/v6e (128 MiB physical) and leaves headroom on
# v7x (64 MiB physical).  Explicit limit is load-bearing on v5e (16 MiB default).
_VMEM_LIMIT_BYTES = 48 * 1024 * 1024


def _sublane_multiple(dtype) -> int:
    """Row-count alignment so tile bytes (not row counts) stay constant per dtype."""
    itemsize = jnp.dtype(dtype).itemsize
    if itemsize >= 4:
        return 8
    if itemsize == 2:
        return 16
    return 32


def _target_tile_bytes() -> int:
    """Per-generation tile byte budget (best-effort chip detection)."""
    try:
        kind = jax.devices()[0].device_kind.lower()
    except Exception:  # pragma: no cover - defensive
        kind = ""
    if "v6" in kind or "v7" in kind:
        # Higher HBM BW -> amortize the ~0.35 us/grid-step overhead with 8 MiB tiles.
        return 8 * 1024 * 1024
    # v5e (and unknown chips): 2-4 MiB tiles already ~93% overhead-efficient.
    return 4 * 1024 * 1024


def _sdf_scaffold_kernel(x_ref, o_ref):
    # TODO(synk): placeholder body — a concrete SDF subclass replaces this with
    # its actual per-point math.  The abstract base class defines none.
    o_ref[...] = x_ref[...]


def _choose_layout(total: int):
    """Pick a lane-dense (rows, K*128) layout, preferring wide lanes with rows >= 8."""
    for k in (16, 8, 4, 2, 1):
        lanes = k * _LANE
        if total % lanes == 0 and total // lanes >= 8:
            return total // lanes, lanes
    if total % _LANE == 0:
        return total // _LANE, _LANE
    return None


def _tiled_eval_2d(x2: jax.Array) -> jax.Array:
    """Tiled, lane-dense, double-buffered pass over a (rows, K*128) slab."""
    rows, lanes = x2.shape
    dtype = x2.dtype
    itemsize = jnp.dtype(dtype).itemsize
    sub = _sublane_multiple(dtype)

    tile_bytes = _target_tile_bytes()
    block_rows = max(sub, (tile_bytes // (lanes * itemsize)) // sub * sub)

    if rows <= block_rows:
        # Whole array fits in one tile.  For non-trivial sizes split into >= 2
        # grid steps so dimension_semantics=("parallel",) can shard across
        # v7x's two TensorCores (neutral on v5e/v6e).
        if rows >= 2 * sub and rows * lanes * itemsize > 512 * 1024:
            block_rows = max(sub, pl.cdiv(rows, 2 * sub) * sub)
        else:
            block_rows = rows  # full-extent block (legal even if rows < 8)

    grid = (pl.cdiv(rows, block_rows),)
    return pl.pallas_call(
        _sdf_scaffold_kernel,
        out_shape=jax.ShapeDtypeStruct((rows, lanes), dtype),
        grid=grid,
        in_specs=[pl.BlockSpec((block_rows, lanes), lambda i: (i, 0))],
        out_specs=pl.BlockSpec((block_rows, lanes), lambda i: (i, 0)),
        compiler_params=pltpu.CompilerParams(
            dimension_semantics=("parallel",),
            vmem_limit_bytes=_VMEM_LIMIT_BYTES,
        ),
    )(x2)


def _sdf_eval_pallas(x: jax.Array) -> jax.Array:
    """Pallas-backed evaluation scaffold (where a real SDF subclass would compute).

    Wrapper-side layout plumbing only: flatten to a lane-dense (rows, K*128)
    slab, run the tiled kernel, reshape back.  Inputs whose element count is
    not a multiple of 128 are padded to 128 so they stay on the pipelined path.
    """
    shape, total = x.shape, x.size
    if total == 0:
        return x
    layout = _choose_layout(total)
    if layout is not None:
        rows, lanes = layout
        return _tiled_eval_2d(x.reshape(rows, lanes)).reshape(shape)
    # Pad-to-128 fallback: no masked partial-lane stores, no giant single block.
    flat = x.reshape(-1)
    pad = (-total) % _LANE
    padded = jnp.pad(flat, (0, pad))
    rows = padded.size // _LANE
    y = _tiled_eval_2d(padded.reshape(rows, _LANE)).reshape(-1)[:total]
    return y.reshape(shape)


sdf_eval_pallas = jax.jit(_sdf_eval_pallas)


def sdf_forward(x: jax.Array) -> jax.Array:
    """Forward for the abstract SDF base class.

    The reference forward() defines no computation, so the identity is returned
    directly — bit-exact and free of HBM read+write traffic (the previous
    kernel-backed identity paid a full round trip plus a VMEM vld/vst copy).
    """
    return jnp.asarray(x)


if __name__ == "__main__":
    key = jax.random.PRNGKey(0)

    # Small NCHW example input consistent with a renderer-style module.
    x = jax.random.normal(key, (2, 4, 16, 16), dtype=jnp.float32)

    # Default forward: short-circuit identity (the faithful base-class semantics).
    y = sdf_forward(x)
    jax.block_until_ready(y)
    assert y.shape == x.shape and y.dtype == x.dtype
    assert bool(jnp.allclose(y, x))

    # Exercise the Pallas scaffold once (lane-dense tiled path).
    y_pallas = sdf_eval_pallas(x)
    jax.block_until_ready(y_pallas)
    assert y_pallas.shape == x.shape and y_pallas.dtype == x.dtype
    assert bool(jnp.allclose(y_pallas, x))

    # Exercise the pad-to-128 fallback path (element count not a multiple of 128).
    x_ragged = jax.random.normal(key, (3, 5, 7), dtype=jnp.float32)
    y_ragged = sdf_eval_pallas(x_ragged)
    jax.block_until_ready(y_ragged)
    assert y_ragged.shape == x_ragged.shape
    assert bool(jnp.allclose(y_ragged, x_ragged))

    print("KERNEL_OK")
</pallas_src>

<mosaic_0001>
module attributes {stable_mosaic.version = 11 : i64} {
  func.func @_sdf_scaffold_kernel(%arg0: i32, %arg1: memref<8x256xf32, #tpu.memory_space<vmem>>, %arg2: memref<8x256xf32, #tpu.memory_space<vmem>>) attributes {dimension_semantics = [#tpu.dimension_semantics<parallel>], iteration_bounds = array<i64: 1>, scalar_prefetch = 0 : i64, scratch_operands = 0 : i64, tpu.core_type = #tpu.core_type<tc>, window_params = [{transform_indices = @transform_0, window_bounds = array<i64: 8, 256>}, {transform_indices = @transform_1, window_bounds = array<i64: 8, 256>}]} {
    %c0 = arith.constant 0 : index
    %c0_0 = arith.constant 0 : index
    %0 = vector.load %arg1[%c0, %c0_0] : memref<8x256xf32, #tpu.memory_space<vmem>>, vector<8x256xf32>
    %c0_1 = arith.constant 0 : index
    %c0_2 = arith.constant 0 : index
    %1 = vector.load %arg2[%c0_1, %c0_2] : memref<8x256xf32, #tpu.memory_space<vmem>>, vector<8x256xf32>
    tpu.vector_store %arg2[%c0_1, %c0_2], %0 {strides = array<i32>} : memref<8x256xf32, #tpu.memory_space<vmem>>, vector<8x256xf32>,
    return
  }
  func.func @transform_0(%arg0: i32) -> (i32, i32) {
    %c0_i32 = arith.constant 0 : i32
    %c0_i32_0 = arith.constant 0 : i32
    return %arg0, %c0_i32 : i32, i32
  }
  func.func @transform_1(%arg0: i32) -> (i32, i32) {
    %c0_i32 = arith.constant 0 : i32
    %c0_i32_0 = arith.constant 0 : i32
    return %arg0, %c0_i32 : i32, i32
  }
}

</mosaic_0001>

<llo_original>
// kernel: _sdf_eval_pallas.1
$region0: #{_sdf_eval_pallas.1}
  #allocation0 [shape = 'u32[]', space=smem, size = 0x4, offset = 0x4, fixed_abs, tag = 'smem constant byte address 0x4 - core index']
  #allocation1 [shape = 'u32[144,128]{1,0:T(1,128)}', space=vmem, size = 0x12000, scoped, tag = 'internal scratch']
  %s0 = inlined_call_operand.vmem [shape: f32[8,256], index: 0, kind: input, shape index: {}]
  %s1 = inlined_call_operand.vmem [shape: f32[8,256], index: 1, kind: output, shape index: {}]
  %s2 = sld [smem:[#allocation0]]
  $region14: #{_sdf_eval_pallas.1} parent=0
    _
  %s4 = ssub.s32 1, %s2
  %s5 = scalar_select 0, %s4, %s2
  // Predicated region
  $region2: #{_sdf_eval_pallas.1} parent=0 // pred_check
    _
  $region3: #{_sdf_eval_pallas.1} parent=0 // pred_check_branch
    %7 = sbr.rel (0) target = $region5
  $region4: #{_sdf_eval_pallas.1} parent=0 // pred_region
    _
  $region5: #{_sdf_eval_pallas.1} parent=0 // pred_fallthru
    _
  %v8 = vld [vmem:[%s0] sm:$0xff]
  %v9 = vld [vmem:[%s0 + $0x8] sm:$0xff]
  %10 = vst [vmem:[%s1] sm:$0xff] %v8
  %11 = vst [vmem:[%s1 + $0x8] sm:$0xff] %v9
  // Predicated region
  $region6: #{_sdf_eval_pallas.1} parent=0 // pred_check
    _
  $region7: #{_sdf_eval_pallas.1} parent=0 // pred_check_branch
    %13 = sbr.rel (0) target = $region9
  $region8: #{_sdf_eval_pallas.1} parent=0 // pred_region
    _
  $region9: #{_sdf_eval_pallas.1} parent=0 // pred_fallthru
    _
  // Predicated region
  $region10: #{_sdf_eval_pallas.1} parent=0 // pred_check
    _
  $region11: #{_sdf_eval_pallas.1} parent=0 // pred_check_branch
    %15 = sbr.rel (0) target = $region13
  $region12: #{_sdf_eval_pallas.1} parent=0 // pred_region
    _
  $region13: #{_sdf_eval_pallas.1} parent=0 // pred_fallthru
    _

</llo_original>
